<compile_context>
chip_gen: v7x
topology: tpu7x:2x2x1
jax: 0.10.0
libtpu: 0.0.40
codegen_flags: <defaults>
</compile_context>

<pallas_src>
import functools

import jax
import jax.numpy as jnp
from jax import lax
from jax.experimental import pallas as pl
from jax.experimental.pallas import tpu as pltpu


_VMEM_LIMIT = 48 * 1024 * 1024   # above v5e's 16 MiB default, headroom on v7x


def _round_up(x, m):
    return ((x + m - 1) // m) * m


# ---------------------------------------------------------------------------
# Kernels
# ---------------------------------------------------------------------------

def _pw_kernel(x_ref, w_ref, scale_ref, bias_ref, out_ref, *, relu):
    """1x1 conv (channel matmul, bf16 operands) + folded-BN (+ ReLU)."""
    acc = jnp.dot(x_ref[...], w_ref[...], preferred_element_type=jnp.float32)
    y = acc * scale_ref[...] + bias_ref[...]
    if relu:
        y = jnp.maximum(y, 0.0)
    out_ref[...] = y.astype(out_ref.dtype)


def _pw_residual_kernel(x_ref, w_ref, scale_ref, bias_ref, res_ref, out_ref):
    """1x1 conv + folded-BN + residual add + ReLU, fully fused."""
    acc = jnp.dot(x_ref[...], w_ref[...], preferred_element_type=jnp.float32)
    y = acc * scale_ref[...] + bias_ref[...] + res_ref[...].astype(jnp.float32)
    out_ref[...] = jnp.maximum(y, 0.0).astype(out_ref.dtype)


def _conv3x3_kernel(x_ref, w_ref, scale_ref, bias_ref, out_ref, xp_ref,
                    *, h_out, w_out, stride):
    """3x3 conv + folded-BN + ReLU.  One grid step = one image.

    x_ref : (1, H, W, P) bf16 (unpadded)   w_ref : (9, P, P) bf16
    xp_ref: (H+2, W+2, P) bf16 VMEM scratch (halo built here, no HBM pad)
    out_ref: (1, Ho, Wo, P)
    """
    h, w, p = x_ref.shape[1], x_ref.shape[2], x_ref.shape[3]
    hp, wp = h + 2, w + 2

    # Build the zero-padded halo in VMEM (cheap; avoids a full HBM pad pass).
    xp_ref[...] = jnp.zeros(xp_ref.shape, xp_ref.dtype)
    xp_ref[1:hp - 1, 1:wp - 1, :] = x_ref[0]
    xp = xp_ref[...]                                   # (Hp, Wp, P) bf16

    h_span = stride * (h_out - 1) + 1
    w_span = stride * (w_out - 1) + 1
    acc = jnp.zeros((h_out * w_out, p), jnp.float32)
    for kh in range(3):                                # statically unrolled
        for kw in range(3):
            if stride == 1:
                xs = xp[kh:kh + h_out, kw:kw + w_out, :]
            else:
                xs = lax.slice(xp, (kh, kw, 0),
                               (kh + h_span, kw + w_span, p),
                               (stride, stride, 1))
            acc = acc + jnp.dot(xs.reshape(h_out * w_out, p),
                                w_ref[kh * 3 + kw],
                                preferred_element_type=jnp.float32)
    y = acc * scale_ref[...] + bias_ref[...]
    y = jnp.maximum(y, 0.0)
    out_ref[0] = y.reshape(h_out, w_out, p).astype(out_ref.dtype)


# ---------------------------------------------------------------------------
# Pallas wrappers
# ---------------------------------------------------------------------------

def _pointwise_conv_bn(x2d, w, scale, bias, residual=None, relu=True,
                       out_dtype=jnp.bfloat16, tile_m=512):
    """y = [relu]((x2d @ w) * scale + bias [+ residual]), tiled over rows."""
    m, cin = x2d.shape
    cout = w.shape[1]
    tile_m = min(tile_m, _round_up(m, 8))
    grid = (pl.cdiv(m, tile_m),)     # ragged trailing block handled by Pallas

    in_specs = [
        pl.BlockSpec((tile_m, cin), lambda i: (i, 0)),
        pl.BlockSpec((cin, cout), lambda i: (0, 0)),
        pl.BlockSpec((1, cout), lambda i: (0, 0)),
        pl.BlockSpec((1, cout), lambda i: (0, 0)),
    ]
    args = [x2d, w, scale, bias]
    if residual is None:
        kernel = functools.partial(_pw_kernel, relu=relu)
    else:
        kernel = _pw_residual_kernel
        in_specs.append(pl.BlockSpec((tile_m, cout), lambda i: (i, 0)))
        args.append(residual)

    return pl.pallas_call(
        kernel,
        out_shape=jax.ShapeDtypeStruct((m, cout), out_dtype),
        grid=grid,
        in_specs=in_specs,
        out_specs=pl.BlockSpec((tile_m, cout), lambda i: (i, 0)),
        compiler_params=pltpu.CompilerParams(
            dimension_semantics=("parallel",),
            vmem_limit_bytes=_VMEM_LIMIT),
    )(*args)


def _conv3x3_bn_relu(x_nhwc, w9, scale, bias, stride):
    """3x3 conv, stride `stride`, padding 1, fused BN + ReLU. bf16 in/out."""
    b, h, w, p = x_nhwc.shape
    h_out = (h - 1) // stride + 1
    w_out = (w - 1) // stride + 1

    kernel = functools.partial(_conv3x3_kernel, h_out=h_out, w_out=w_out,
                               stride=stride)
    return pl.pallas_call(
        kernel,
        out_shape=jax.ShapeDtypeStruct((b, h_out, w_out, p), jnp.bfloat16),
        grid=(b,),
        in_specs=[
            pl.BlockSpec((1, h, w, p), lambda i: (i, 0, 0, 0)),
            pl.BlockSpec((9, p, p), lambda i: (0, 0, 0)),
            pl.BlockSpec((1, p), lambda i: (0, 0)),
            pl.BlockSpec((1, p), lambda i: (0, 0)),
        ],
        out_specs=pl.BlockSpec((1, h_out, w_out, p), lambda i: (i, 0, 0, 0)),
        scratch_shapes=[pltpu.VMEM((h + 2, w + 2, p), jnp.bfloat16)],
        compiler_params=pltpu.CompilerParams(
            dimension_semantics=("parallel",),
            vmem_limit_bytes=_VMEM_LIMIT),
    )(x_nhwc, w9, scale, bias)


# ---------------------------------------------------------------------------
# Parameter preparation (hoisted: do once per network, not per forward)
# ---------------------------------------------------------------------------

def _fold_bn(gamma, beta, mean, var, eps=1e-5):
    scale = gamma / jnp.sqrt(var + eps)
    bias = beta - mean * scale
    return (scale.reshape(1, -1).astype(jnp.float32),
            bias.reshape(1, -1).astype(jnp.float32))


def prepare_bottleneck_params(params, downsample=None, eps=1e-5):
    """Fold BN stats and pre-transpose conv weights into bf16 matmul layout."""
    planes, cin = params["conv1_w"].shape[:2]
    c_out = 4 * planes
    prep = {
        "w1": params["conv1_w"].reshape(planes, cin).T.astype(jnp.bfloat16),
        "w2": jnp.transpose(params["conv2_w"], (2, 3, 1, 0)).reshape(
            9, planes, planes).astype(jnp.bfloat16),
        "w3": params["conv3_w"].reshape(c_out, planes).T.astype(jnp.bfloat16),
    }
    prep["s1"], prep["b1"] = _fold_bn(params["bn1_gamma"], params["bn1_beta"],
                                      params["bn1_mean"], params["bn1_var"], eps)
    prep["s2"], prep["b2"] = _fold_bn(params["bn2_gamma"], params["bn2_beta"],
                                      params["bn2_mean"], params["bn2_var"], eps)
    prep["s3"], prep["b3"] = _fold_bn(params["bn3_gamma"], params["bn3_beta"],
                                      params["bn3_mean"], params["bn3_var"], eps)
    if downsample is not None:
        prep["wd"] = downsample["conv_w"].reshape(c_out, cin).T.astype(
            jnp.bfloat16)
        prep["sd"], prep["bd"] = _fold_bn(
            downsample["bn_gamma"], downsample["bn_beta"],
            downsample["bn_mean"], downsample["bn_var"], eps)
    return prep


# ---------------------------------------------------------------------------
# Forward
# ---------------------------------------------------------------------------

def bottleneck_forward_nhwc(x_nhwc, prep, stride=1):
    """Core forward in NHWC (channels on the lane axis)."""
    b, h, w, cin = x_nhwc.shape
    planes = prep["w1"].shape[1]
    c_out = 4 * planes

    x = x_nhwc.astype(jnp.bfloat16)
    x2d = x.reshape(b * h * w, cin)

    # conv1 (1x1) + bn1 + relu  -> bf16 in HBM
    y1 = _pointwise_conv_bn(x2d, prep["w1"], prep["s1"], prep["b1"],
                            relu=True, out_dtype=jnp.bfloat16)
    y1 = y1.reshape(b, h, w, planes)

    # conv2 (3x3, stride, pad=1) + bn2 + relu  (halo built in VMEM)
    y2 = _conv3x3_bn_relu(y1, prep["w2"], prep["s2"], prep["b2"], stride)
    _, h_out, w_out, _ = y2.shape
    y2_2d = y2.reshape(b * h_out * w_out, planes)

    # Residual path.
    if "wd" in prep:
        x_ds = x[:, ::stride, ::stride, :].reshape(b * h_out * w_out, cin)
        residual = _pointwise_conv_bn(x_ds, prep["wd"], prep["sd"], prep["bd"],
                                      relu=False, out_dtype=jnp.bfloat16)
    else:
        assert stride == 1 and cin == c_out, (
            "identity residual requires stride == 1 and C_in == 4*planes")
        residual = x2d

    # conv3 (1x1) + bn3 + residual add + relu, fused in one kernel (f32 out).
    out2d = _pointwise_conv_bn(y2_2d, prep["w3"], prep["s3"], prep["b3"],
                               residual=residual, relu=True,
                               out_dtype=jnp.float32)
    return out2d.reshape(b, h_out, w_out, c_out)


def bottleneck_forward(x, params, stride=1, downsample=None, eps=1e-5):
    """PyTorch-compatible interface: NCHW f32 in/out (inference-mode BN).

    In a full network the NCHW<->NHWC boundary transposes and the parameter
    prep would be hoisted (activations kept NHWC between blocks, weights
    pre-folded at load time); kept here for interface parity.
    """
    prep = prepare_bottleneck_params(params, downsample, eps)
    x_nhwc = jnp.transpose(x, (0, 2, 3, 1))
    out = bottleneck_forward_nhwc(x_nhwc, prep, stride)
    return jnp.transpose(out, (0, 3, 1, 2)).astype(jnp.float32)


# ---------------------------------------------------------------------------
# Pure-JAX reference (validation)
# ---------------------------------------------------------------------------

def _bottleneck_ref(x, params, stride=1, downsample=None, eps=1e-5):
    prec = lax.Precision.HIGHEST

    def bn(y, g, beta, m, v):
        inv = g / jnp.sqrt(v + eps)
        return (y * inv[None, :, None, None]
                + (beta - m * inv)[None, :, None, None])

    def conv(y, w, s, pad):
        return lax.conv_general_dilated(
            y, w, window_strides=(s, s), padding=pad,
            dimension_numbers=("NCHW", "OIHW", "NCHW"), precision=prec)

    out = conv(x, params["conv1_w"], 1, "VALID")
    out = jax.nn.relu(bn(out, params["bn1_gamma"], params["bn1_beta"],
                         params["bn1_mean"], params["bn1_var"]))
    out = conv(out, params["conv2_w"], stride, ((1, 1), (1, 1)))
    out = jax.nn.relu(bn(out, params["bn2_gamma"], params["bn2_beta"],
                         params["bn2_mean"], params["bn2_var"]))
    out = conv(out, params["conv3_w"], 1, "VALID")
    out = bn(out, params["bn3_gamma"], params["bn3_beta"],
             params["bn3_mean"], params["bn3_var"])
    if downsample is not None:
        residual = conv(x, downsample["conv_w"], stride, "VALID")
        residual = bn(residual, downsample["bn_gamma"], downsample["bn_beta"],
                      downsample["bn_mean"], downsample["bn_var"])
    else:
        residual = x
    return jax.nn.relu(out + residual)


def _make_params(key, inplanes, planes):
    c_out = 4 * planes
    ks = jax.random.split(key, 6)

    def bn_params(k, c):
        k1, k2, k3, k4 = jax.random.split(k, 4)
        return (jax.random.uniform(k1, (c,), jnp.float32, 0.5, 1.5),   # gamma
                jax.random.normal(k2, (c,), jnp.float32) * 0.1,        # beta
                jax.random.normal(k3, (c,), jnp.float32) * 0.1,        # run_mean
                jax.random.uniform(k4, (c,), jnp.float32, 0.5, 1.5))   # run_var

    g1, be1, m1, v1 = bn_params(ks[0], planes)
    g2, be2, m2, v2 = bn_params(ks[1], planes)
    g3, be3, m3, v3 = bn_params(ks[2], c_out)
    return dict(
        conv1_w=jax.random.normal(ks[3], (planes, inplanes, 1, 1),
                                  jnp.float32) * 0.1,
        conv2_w=jax.random.normal(ks[4], (planes, planes, 3, 3),
                                  jnp.float32) * 0.1,
        conv3_w=jax.random.normal(ks[5], (c_out, planes, 1, 1),
                                  jnp.float32) * 0.1,
        bn1_gamma=g1, bn1_beta=be1, bn1_mean=m1, bn1_var=v1,
        bn2_gamma=g2, bn2_beta=be2, bn2_mean=m2, bn2_var=v2,
        bn3_gamma=g3, bn3_beta=be3, bn3_mean=m3, bn3_var=v3,
    )


if __name__ == "__main__":
    key = jax.random.PRNGKey(0)
    k_params, k_x = jax.random.split(key)

    # planes=32 -> conv3 output C=128 (lane-dense); identity residual path.
    B, planes, H, W = 2, 32, 16, 16
    inplanes = 4 * planes
    stride = 1

    params = _make_params(k_params, inplanes, planes)
    x = jax.random.normal(k_x, (B, inplanes, H, W), jnp.float32)

    out = bottleneck_forward(x, params, stride=stride, downsample=None)
    out = jax.block_until_ready(out)

    # Reference fed the same bf16-rounded operands (kernel uses bf16 MXU
    # operands + bf16 intermediates with f32 accumulation).
    def _rnd(a):
        return a.astype(jnp.bfloat16).astype(jnp.float32)

    params_r = dict(params)
    for name in ("conv1_w", "conv2_w", "conv3_w"):
        params_r[name] = _rnd(params[name])
    ref = _bottleneck_ref(_rnd(x), params_r, stride=stride, downsample=None)

    assert out.shape == (B, 4 * planes, H, W)
    max_err = float(jnp.max(jnp.abs(out - ref)))
    assert jnp.allclose(out, ref, rtol=5e-2, atol=5e-2), (
        f"mismatch vs reference: max abs err = {max_err}")

    print("KERNEL_OK")
</pallas_src>

<mosaic_0001>
module attributes {stable_mosaic.version = 11 : i64} {
  func.func @_pw_kernel(%arg0: i32, %arg1: memref<512x128xbf16, #tpu.memory_space<vmem>>, %arg2: memref<128x32xbf16, #tpu.memory_space<vmem>>, %arg3: memref<1x32xf32, #tpu.memory_space<vmem>>, %arg4: memref<1x32xf32, #tpu.memory_space<vmem>>, %arg5: memref<512x32xbf16, #tpu.memory_space<vmem>>) attributes {dimension_semantics = [#tpu.dimension_semantics<parallel>], iteration_bounds = array<i64: 1>, scalar_prefetch = 0 : i64, scratch_operands = 0 : i64, tpu.core_type = #tpu.core_type<tc>, window_params = [{transform_indices = @transform_0, window_bounds = array<i64: 512, 128>}, {pipeline_mode = #tpu.pipeline_mode<synchronous>, transform_indices = @transform_1, window_bounds = array<i64: 128, 32>}, {pipeline_mode = #tpu.pipeline_mode<synchronous>, transform_indices = @transform_2, window_bounds = array<i64: 1, 32>}, {pipeline_mode = #tpu.pipeline_mode<synchronous>, transform_indices = @transform_3, window_bounds = array<i64: 1, 32>}, {transform_indices = @transform_4, window_bounds = array<i64: 512, 32>}]} {
    %c0 = arith.constant 0 : index
    %c0_0 = arith.constant 0 : index
    %0 = vector.load %arg1[%c0, %c0_0] : memref<512x128xbf16, #tpu.memory_space<vmem>>, vector<512x128xbf16>
    %c0_1 = arith.constant 0 : index
    %c0_2 = arith.constant 0 : index
    %1 = vector.load %arg2[%c0_1, %c0_2] : memref<128x32xbf16, #tpu.memory_space<vmem>>, vector<128x32xbf16>
    %cst = arith.constant dense<0.000000e+00> : vector<512x32xf32>
    %2 = tpu.matmul %0, %1, %cst {dimension_numbers = #tpu.dot_dimension_numbers<[1], [0], [0], [1], [0, 0, 1, 1], [], []>} : vector<512x128xbf16>, vector<128x32xbf16>, vector<512x32xf32> -> vector<512x32xf32>
    %c0_3 = arith.constant 0 : index
    %c0_4 = arith.constant 0 : index
    %3 = vector.load %arg3[%c0_3, %c0_4] : memref<1x32xf32, #tpu.memory_space<vmem>>, vector<1x32xf32>
    %4 = vector.broadcast %3 : vector<1x32xf32> to vector<512x32xf32>
    %5 = arith.mulf %2, %4 : vector<512x32xf32>
    %c0_5 = arith.constant 0 : index
    %c0_6 = arith.constant 0 : index
    %6 = vector.load %arg4[%c0_5, %c0_6] : memref<1x32xf32, #tpu.memory_space<vmem>>, vector<1x32xf32>
    %7 = vector.broadcast %6 : vector<1x32xf32> to vector<512x32xf32>
    %8 = arith.addf %5, %7 : vector<512x32xf32>
    %cst_7 = arith.constant 0.000000e+00 : f32
    %9 = vector.broadcast %cst_7 : f32 to vector<512x32xf32>
    %10 = arith.maximumf %8, %9 : vector<512x32xf32>
    %11 = arith.truncf %10 : vector<512x32xf32> to vector<512x32xbf16>
    %c0_8 = arith.constant 0 : index
    %c0_9 = arith.constant 0 : index
    %12 = vector.load %arg5[%c0_8, %c0_9] : memref<512x32xbf16, #tpu.memory_space<vmem>>, vector<512x32xbf16>
    tpu.vector_store %arg5[%c0_8, %c0_9], %11 {strides = array<i32>} : memref<512x32xbf16, #tpu.memory_space<vmem>>, vector<512x32xbf16>,
    return
  }
  func.func @transform_0(%arg0: i32) -> (i32, i32) {
    %c0_i32 = arith.constant 0 : i32
    %c0_i32_0 = arith.constant 0 : i32
    return %arg0, %c0_i32 : i32, i32
  }
  func.func @transform_1(%arg0: i32) -> (i32, i32) {
    %c0_i32 = arith.constant 0 : i32
    %c0_i32_0 = arith.constant 0 : i32
    %c0_i32_1 = arith.constant 0 : i32
    return %c0_i32, %c0_i32_0 : i32, i32
  }
  func.func @transform_2(%arg0: i32) -> (i32, i32) {
    %c0_i32 = arith.constant 0 : i32
    %c0_i32_0 = arith.constant 0 : i32
    %c0_i32_1 = arith.constant 0 : i32
    return %c0_i32, %c0_i32_0 : i32, i32
  }
  func.func @transform_3(%arg0: i32) -> (i32, i32) {
    %c0_i32 = arith.constant 0 : i32
    %c0_i32_0 = arith.constant 0 : i32
    %c0_i32_1 = arith.constant 0 : i32
    return %c0_i32, %c0_i32_0 : i32, i32
  }
  func.func @transform_4(%arg0: i32) -> (i32, i32) {
    %c0_i32 = arith.constant 0 : i32
    %c0_i32_0 = arith.constant 0 : i32
    return %arg0, %c0_i32 : i32, i32
  }
}

</mosaic_0001>

<llo_original>
// kernel: tpu_custom_call.1
$region0: #{tpu_custom_call.1}
  #allocation0 [shape = 'u32[]', space=smem, size = 0x4, offset = 0x4, fixed_abs, tag = 'smem constant byte address 0x4 - core index']
  #allocation1 [shape = 'u32[144,128]{1,0:T(1,128)}', space=vmem, size = 0x12000, scoped, tag = 'internal scratch']
  %s0 = inlined_call_operand.hbm [shape: bf16[512,128], index: 0, kind: input, shape index: {}]
  %s1 = inlined_call_operand.vmem [shape: bf16[128,32], index: 1, kind: input, shape index: {}]
  %s2 = inlined_call_operand.vmem [shape: f32[1,32], index: 2, kind: input, shape index: {}]
  %s3 = inlined_call_operand.vmem [shape: f32[1,32], index: 3, kind: input, shape index: {}]
  %s4 = inlined_call_operand.vmem [shape: bf16[512,32], index: 4, kind: output, shape index: {}]
  %s5 = sld [smem:[#allocation0]]
  $region30: #{tpu_custom_call.1} parent=0
    _
  %s7 = ssub.s32 1, %s5
  %s8 = scalar_select 0, %s7, %s5
  $region1: #{tpu_custom_call.1} parent=0
    #allocation2 [shape = 'u8[131072]{0}', space=vmem, size = 0x20000, scoped, tag = 'input window, operand 0, single buffered']
    #allocation3 [shape = 's32[1]{0}', space=sflag, size = 0x4, scoped, tag = 'scoped memory for tpu_custom_call.1']
    %9 = vsyncpa [#allocation3], 0
    // Predicated region
    $region2: #{tpu_custom_call.1} parent=1 // pred_check
      _
    $region3: #{tpu_custom_call.1} parent=1 // pred_check_branch
      %11 = sbr.rel (0) target = $region5
    $region4: #{tpu_custom_call.1} parent=1 // pred_region
      %s13 = ssub.s32 4096, 4096
      %14 = vsyncadd [#allocation3], %s13
      %s15 = sshll.u32 [#allocation2], 4
      %s16 = int_to_ptr.vmem [resolvable:$true] %s15
      %21 = dma.hbm_to_vmem [thread:$0]  %s0, 4096, %s16, [#allocation3], 64, 64, 4
    $region5: #{tpu_custom_call.1} parent=1 // pred_fallthru
      _
    // Predicated region
    $region6: #{tpu_custom_call.1} parent=1 // pred_check
      _
    $region7: #{tpu_custom_call.1} parent=1 // pred_check_branch
      %23 = sbr.rel (0) target = $region9
    $region8: #{tpu_custom_call.1} parent=1 // pred_region
      _
    $region9: #{tpu_custom_call.1} parent=1 // pred_fallthru
      _
    // Predicated region
    $region10: #{tpu_custom_call.1} parent=1 // pred_check
      _
    $region11: #{tpu_custom_call.1} parent=1 // pred_check_branch
      %25 = sbr.rel (0) target = $region13
    $region12: #{tpu_custom_call.1} parent=1 // pred_region
      _
    $region13: #{tpu_custom_call.1} parent=1 // pred_fallthru
      _
    // Predicated region
    $region14: #{tpu_custom_call.1} parent=1 // pred_check
      _
    $region15: #{tpu_custom_call.1} parent=1 // pred_check_branch
      %27 = sbr.rel (0) target = $region17
    $region16: #{tpu_custom_call.1} parent=1 // pred_region
      _
    $region17: #{tpu_custom_call.1} parent=1 // pred_fallthru
      _
    // Predicated region
    $region18: #{tpu_custom_call.1} parent=1 // pred_check
      _
    $region19: #{tpu_custom_call.1} parent=1 // pred_check_branch
      %29 = sbr.rel (0) target = $region21
    $region20: #{tpu_custom_call.1} parent=1 // pred_region
      %30 = dma.done [#allocation3], 4096
    $region21: #{tpu_custom_call.1} parent=1 // pred_fallthru
      _
    %v32 = vld [vmem:[#allocation2] sm:$0xf]
    %v33 = vld [vmem:[#allocation2 + $0x4] sm:$0xf]
    %v34 = vld [vmem:[#allocation2 + $0x8] sm:$0xf]
    %v35 = vld [vmem:[#allocation2 + $0xc] sm:$0xf]
    %v36 = vld [vmem:[#allocation2 + $0x10] sm:$0xf]
    %v37 = vld [vmem:[#allocation2 + $0x14] sm:$0xf]
    %v38 = vld [vmem:[#allocation2 + $0x18] sm:$0xf]
    %v39 = vld [vmem:[#allocation2 + $0x1c] sm:$0xf]
    %v40 = vld [vmem:[#allocation2 + $0x20] sm:$0xf]
    %v41 = vld [vmem:[#allocation2 + $0x24] sm:$0xf]
    %v42 = vld [vmem:[#allocation2 + $0x28] sm:$0xf]
    %v43 = vld [vmem:[#allocation2 + $0x2c] sm:$0xf]
    %v44 = vld [vmem:[#allocation2 + $0x30] sm:$0xf]
    %v45 = vld [vmem:[#allocation2 + $0x34] sm:$0xf]
    %v46 = vld [vmem:[#allocation2 + $0x38] sm:$0xf]
    %v47 = vld [vmem:[#allocation2 + $0x3c] sm:$0xf]
    %v48 = vld [vmem:[#allocation2 + $0x40] sm:$0xf]
    %v49 = vld [vmem:[#allocation2 + $0x44] sm:$0xf]
    %v50 = vld [vmem:[#allocation2 + $0x48] sm:$0xf]
    %v51 = vld [vmem:[#allocation2 + $0x4c] sm:$0xf]
    %v52 = vld [vmem:[#allocation2 + $0x50] sm:$0xf]
    %v53 = vld [vmem:[#allocation2 + $0x54] sm:$0xf]
    %v54 = vld [vmem:[#allocation2 + $0x58] sm:$0xf]
    %v55 = vld [vmem:[#allocation2 + $0x5c] sm:$0xf]
    %v56 = vld [vmem:[#allocation2 + $0x60] sm:$0xf]
    %v57 = vld [vmem:[#allocation2 + $0x64] sm:$0xf]
    %v58 = vld [vmem:[#allocation2 + $0x68] sm:$0xf]
    %v59 = vld [vmem:[#allocation2 + $0x6c] sm:$0xf]
    %v60 = vld [vmem:[#allocation2 + $0x70] sm:$0xf]
    %v61 = vld [vmem:[#allocation2 + $0x74] sm:$0xf]
    %v62 = vld [vmem:[#allocation2 + $0x78] sm:$0xf]
    %v63 = vld [vmem:[#allocation2 + $0x7c] sm:$0xf]
    %v64 = vld [vmem:[#allocation2 + $0x80] sm:$0xf]
    %v65 = vld [vmem:[#allocation2 + $0x84] sm:$0xf]
    %v66 = vld [vmem:[#allocation2 + $0x88] sm:$0xf]
    %v67 = vld [vmem:[#allocation2 + $0x8c] sm:$0xf]
    %v68 = vld [vmem:[#allocation2 + $0x90] sm:$0xf]
    %v69 = vld [vmem:[#allocation2 + $0x94] sm:$0xf]
    %v70 = vld [vmem:[#allocation2 + $0x98] sm:$0xf]
    %v71 = vld [vmem:[#allocation2 + $0x9c] sm:$0xf]
    %v72 = vld [vmem:[#allocation2 + $0xa0] sm:$0xf]
    %v73 = vld [vmem:[#allocation2 + $0xa4] sm:$0xf]
    %v74 = vld [vmem:[#allocation2 + $0xa8] sm:$0xf]
    %v75 = vld [vmem:[#allocation2 + $0xac] sm:$0xf]
    %v76 = vld [vmem:[#allocation2 + $0xb0] sm:$0xf]
    %v77 = vld [vmem:[#allocation2 + $0xb4] sm:$0xf]
    %v78 = vld [vmem:[#allocation2 + $0xb8] sm:$0xf]
    %v79 = vld [vmem:[#allocation2 + $0xbc] sm:$0xf]
    %v80 = vld [vmem:[#allocation2 + $0xc0] sm:$0xf]
    %v81 = vld [vmem:[#allocation2 + $0xc4] sm:$0xf]
    %v82 = vld [vmem:[#allocation2 + $0xc8] sm:$0xf]
    %v83 = vld [vmem:[#allocation2 + $0xcc] sm:$0xf]
    %v84 = vld [vmem:[#allocation2 + $0xd0] sm:$0xf]
    %v85 = vld [vmem:[#allocation2 + $0xd4] sm:$0xf]
    %v86 = vld [vmem:[#allocation2 + $0xd8] sm:$0xf]
    %v87 = vld [vmem:[#allocation2 + $0xdc] sm:$0xf]
    %v88 = vld [vmem:[#allocation2 + $0xe0] sm:$0xf]
    %v89 = vld [vmem:[#allocation2 + $0xe4] sm:$0xf]
    %v90 = vld [vmem:[#allocation2 + $0xe8] sm:$0xf]
    %v91 = vld [vmem:[#allocation2 + $0xec] sm:$0xf]
    %v92 = vld [vmem:[#allocation2 + $0xf0] sm:$0xf]
    %v93 = vld [vmem:[#allocation2 + $0xf4] sm:$0xf]
    %v94 = vld [vmem:[#allocation2 + $0xf8] sm:$0xf]
    %v95 = vld [vmem:[#allocation2 + $0xfc] sm:$0xf]
    %v96 = vld [vmem:[%s1] sm:$0xf]
    %v97 = vld [vmem:[%s1 + $0x4] sm:$0xf]
    %v98 = vld [vmem:[%s1 + $0x8] sm:$0xf]
    %v99 = vld [vmem:[%s1 + $0xc] sm:$0xf]
    %v100 = vld [vmem:[%s1 + $0x10] sm:$0xf]
    %v101 = vld [vmem:[%s1 + $0x14] sm:$0xf]
    %v102 = vld [vmem:[%s1 + $0x18] sm:$0xf]
    %v103 = vld [vmem:[%s1 + $0x1c] sm:$0xf]
    %v104 = vld [vmem:[%s1 + $0x20] sm:$0xf]
    %v105 = vld [vmem:[%s1 + $0x24] sm:$0xf]
    %v106 = vld [vmem:[%s1 + $0x28] sm:$0xf]
    %v107 = vld [vmem:[%s1 + $0x2c] sm:$0xf]
    %v108 = vld [vmem:[%s1 + $0x30] sm:$0xf]
    %v109 = vld [vmem:[%s1 + $0x34] sm:$0xf]
    %v110 = vld [vmem:[%s1 + $0x38] sm:$0xf]
    %v111 = vld [vmem:[%s1 + $0x3c] sm:$0xf]
    %v176 = vunpack.c.l.b16 %v32
    %v177 = vunpack.c.l.b16 %v33
    %v178 = vunpack.c.l.b16 %v34
    %v179 = vunpack.c.l.b16 %v35
    %v180 = vunpack.c.l.b16 %v36
    %v181 = vunpack.c.l.b16 %v37
    %v182 = vunpack.c.l.b16 %v38
    %v183 = vunpack.c.l.b16 %v39
    %v184 = vunpack.c.l.b16 %v40
    %v185 = vunpack.c.l.b16 %v41
    %v186 = vunpack.c.l.b16 %v42
    %v187 = vunpack.c.l.b16 %v43
    %v188 = vunpack.c.l.b16 %v44
    %v189 = vunpack.c.l.b16 %v45
    %v190 = vunpack.c.l.b16 %v46
    %v191 = vunpack.c.l.b16 %v47
    %v192 = vunpack.c.l.b16 %v48
    %v193 = vunpack.c.l.b16 %v49
    %v194 = vunpack.c.l.b16 %v50
    %v195 = vunpack.c.l.b16 %v51
    %v196 = vunpack.c.l.b16 %v52
    %v197 = vunpack.c.l.b16 %v53
    %v198 = vunpack.c.l.b16 %v54
    %v199 = vunpack.c.l.b16 %v55
    %v200 = vunpack.c.l.b16 %v56
    %v201 = vunpack.c.l.b16 %v57
    %v202 = vunpack.c.l.b16 %v58
    %v203 = vunpack.c.l.b16 %v59
    %v204 = vunpack.c.l.b16 %v60
    %v205 = vunpack.c.l.b16 %v61
    %v206 = vunpack.c.l.b16 %v62
    %v207 = vunpack.c.l.b16 %v63
    %v208 = vunpack.c.l.b16 %v64
    %v209 = vunpack.c.l.b16 %v65
    %v210 = vunpack.c.l.b16 %v66
    %v211 = vunpack.c.l.b16 %v67
    %v212 = vunpack.c.l.b16 %v68
    %v213 = vunpack.c.l.b16 %v69
    %v214 = vunpack.c.l.b16 %v70
    %v215 = vunpack.c.l.b16 %v71
    %v216 = vunpack.c.l.b16 %v72
    %v217 = vunpack.c.l.b16 %v73
    %v218 = vunpack.c.l.b16 %v74
    %v219 = vunpack.c.l.b16 %v75
    %v220 = vunpack.c.l.b16 %v76
    %v221 = vunpack.c.l.b16 %v77
    %v222 = vunpack.c.l.b16 %v78
    %v223 = vunpack.c.l.b16 %v79
    %v224 = vunpack.c.l.b16 %v80
    %v225 = vunpack.c.l.b16 %v81
    %v226 = vunpack.c.l.b16 %v82
    %v227 = vunpack.c.l.b16 %v83
    %v228 = vunpack.c.l.b16 %v84
    %v229 = vunpack.c.l.b16 %v85
    %v230 = vunpack.c.l.b16 %v86
    %v231 = vunpack.c.l.b16 %v87
    %v232 = vunpack.c.l.b16 %v88
    %v233 = vunpack.c.l.b16 %v89
    %v234 = vunpack.c.l.b16 %v90
    %v235 = vunpack.c.l.b16 %v91
    %v236 = vunpack.c.l.b16 %v92
    %v237 = vunpack.c.l.b16 %v93
    %v238 = vunpack.c.l.b16 %v94
    %v239 = vunpack.c.l.b16 %v95
    %v240 = vpack.c.b16 %v177, %v176
    %v241 = vpack.c.b16 %v179, %v178
    %v242 = vpack.c.b16 %v181, %v180
    %v243 = vpack.c.b16 %v183, %v182
    %v244 = vpack.c.b16 %v185, %v184
    %v245 = vpack.c.b16 %v187, %v186
    %v246 = vpack.c.b16 %v189, %v188
    %v247 = vpack.c.b16 %v191, %v190
    %v248 = vpack.c.b16 %v193, %v192
    %v249 = vpack.c.b16 %v195, %v194
    %v250 = vpack.c.b16 %v197, %v196
    %v251 = vpack.c.b16 %v199, %v198
    %v252 = vpack.c.b16 %v201, %v200
    %v253 = vpack.c.b16 %v203, %v202
    %v254 = vpack.c.b16 %v205, %v204
    %v255 = vpack.c.b16 %v207, %v206
    %v256 = vpack.c.b16 %v209, %v208
    %v257 = vpack.c.b16 %v211, %v210
    %v258 = vpack.c.b16 %v213, %v212
    %v259 = vpack.c.b16 %v215, %v214
    %v260 = vpack.c.b16 %v217, %v216
    %v261 = vpack.c.b16 %v219, %v218
    %v262 = vpack.c.b16 %v221, %v220
    %v263 = vpack.c.b16 %v223, %v222
    %v264 = vpack.c.b16 %v225, %v224
    %v265 = vpack.c.b16 %v227, %v226
    %v266 = vpack.c.b16 %v229, %v228
    %v267 = vpack.c.b16 %v231, %v230
    %v268 = vpack.c.b16 %v233, %v232
    %v269 = vpack.c.b16 %v235, %v234
    %v270 = vpack.c.b16 %v237, %v236
    %v271 = vpack.c.b16 %v239, %v238
    %v320 = vunpack.c.l.b16 %v96
    %v321 = vunpack.c.l.b16 %v97
    %v322 = vunpack.c.l.b16 %v98
    %v323 = vunpack.c.l.b16 %v99
    %v324 = vunpack.c.l.b16 %v100
    %v325 = vunpack.c.l.b16 %v101
    %v326 = vunpack.c.l.b16 %v102
    %v327 = vunpack.c.l.b16 %v103
    %v328 = vunpack.c.l.b16 %v104
    %v329 = vunpack.c.l.b16 %v105
    %v330 = vunpack.c.l.b16 %v106
    %v331 = vunpack.c.l.b16 %v107
    %v332 = vunpack.c.l.b16 %v108
    %v333 = vunpack.c.l.b16 %v109
    %v334 = vunpack.c.l.b16 %v110
    %v335 = vunpack.c.l.b16 %v111
    %v336 = vpack.c.b16 %v321, %v320
    %v337 = vpack.c.b16 %v323, %v322
    %v338 = vpack.c.b16 %v325, %v324
    %v339 = vpack.c.b16 %v327, %v326
    %v340 = vpack.c.b16 %v329, %v328
    %v341 = vpack.c.b16 %v331, %v330
    %v342 = vpack.c.b16 %v333, %v332
    %v343 = vpack.c.b16 %v335, %v334
    %352 = vmatprep.subr.bf16.mxu0 0
    %353 = vmatpush1.bf16.msra.mxu0 %v336
    %354 = vmatprep.subr.bf16.mxu0 0
    %355 = vmatpush1.bf16.msra.mxu0 %v337
    %356 = vmatprep.subr.bf16.mxu0 0
    %357 = vmatpush1.bf16.msra.mxu0 %v338
    %358 = vmatprep.subr.bf16.mxu0 0
    %359 = vmatpush1.bf16.msra.mxu0 %v339
    %360 = vmatprep.subr.bf16.mxu0 0
    %361 = vmatpush1.bf16.msra.mxu0 %v340
    %362 = vmatprep.subr.bf16.mxu0 0
    %363 = vmatpush1.bf16.msra.mxu0 %v341
    %364 = vmatprep.subr.bf16.mxu0 0
    %365 = vmatpush1.bf16.msra.mxu0 %v342
    %366 = vmatprep.subr.bf16.mxu0 0
    %367 = vmatpush1.bf16.msra.mxu0 %v343
    %368 = vmatprep.subr.bf16.mxu0 0
    %369 = vmatpush1.bf16.msra.mxu0 0
    %370 = vmatprep.subr.bf16.mxu0 0
    %371 = vmatpush1.bf16.msra.mxu0 0
    %372 = vmatprep.subr.bf16.mxu0 0
    %373 = vmatpush1.bf16.msra.mxu0 0
    %374 = vmatprep.subr.bf16.mxu0 0
    %375 = vmatpush1.bf16.msra.mxu0 0
    %376 = vmatprep.subr.bf16.mxu0 0
    %377 = vmatpush1.bf16.msra.mxu0 0
    %378 = vmatprep.subr.bf16.mxu0 0
    %379 = vmatpush1.bf16.msra.mxu0 0
    %380 = vmatprep.subr.bf16.mxu0 0
    %381 = vmatpush1.bf16.msra.mxu0 0
    %382 = vmatprep.subr.bf16.mxu0 0
    %383 = vmatpush1.bf16.msra.mxu0 0
    %384 = vmatprep.mubr.bf16.mxu0 0
    %385 = vmatmul.mubr.bf16.gmra.mrb[0].mxu0 %v240
    %v386 = vpop.f32.mrb[0].mxu0
    %v387 = vadd.f32 0.0, %v386
    %v388 = vpop.f32.mrb[0].mxu0
    %v389 = vpop.f32.mrb[0].mxu0
    %v390 = vadd.f32 0.0, %v389
    %v391 = vpop.f32.mrb[0].mxu0
    %392 = vmatprep.mubr.bf16.mxu0 0
    %393 = vmatmul.mubr.bf16.gmra.mrb[0].mxu0 %v241
    %v394 = vpop.f32.mrb[0].mxu0
    %v395 = vadd.f32 0.0, %v394
    %v396 = vpop.f32.mrb[0].mxu0
    %v397 = vpop.f32.mrb[0].mxu0
    %v398 = vadd.f32 0.0, %v397
    %v399 = vpop.f32.mrb[0].mxu0
    %400 = vmatprep.mubr.bf16.mxu0 0
    %401 = vmatmul.mubr.bf16.gmra.mrb[0].mxu0 %v242
    %v402 = vpop.f32.mrb[0].mxu0
    %v403 = vadd.f32 0.0, %v402
    %v404 = vpop.f32.mrb[0].mxu0
    %v405 = vpop.f32.mrb[0].mxu0
    %v406 = vadd.f32 0.0, %v405
    %v407 = vpop.f32.mrb[0].mxu0
    %408 = vmatprep.mubr.bf16.mxu0 0
    %409 = vmatmul.mubr.bf16.gmra.mrb[0].mxu0 %v243
    %v410 = vpop.f32.mrb[0].mxu0
    %v411 = vadd.f32 0.0, %v410
    %v412 = vpop.f32.mrb[0].mxu0
    %v413 = vpop.f32.mrb[0].mxu0
    %v414 = vadd.f32 0.0, %v413
    %v415 = vpop.f32.mrb[0].mxu0
    %416 = vmatprep.mubr.bf16.mxu0 0
    %417 = vmatmul.mubr.bf16.gmra.mrb[0].mxu0 %v244
    %v418 = vpop.f32.mrb[0].mxu0
    %v419 = vadd.f32 0.0, %v418
    %v420 = vpop.f32.mrb[0].mxu0
    %v421 = vpop.f32.mrb[0].mxu0
    %v422 = vadd.f32 0.0, %v421
    %v423 = vpop.f32.mrb[0].mxu0
    %424 = vmatprep.mubr.bf16.mxu0 0
    %425 = vmatmul.mubr.bf16.gmra.mrb[0].mxu0 %v245
    %v426 = vpop.f32.mrb[0].mxu0
    %v427 = vadd.f32 0.0, %v426
    %v428 = vpop.f32.mrb[0].mxu0
    %v429 = vpop.f32.mrb[0].mxu0
    %v430 = vadd.f32 0.0, %v429
    %v431 = vpop.f32.mrb[0].mxu0
    %432 = vmatprep.mubr.bf16.mxu0 0
    %433 = vmatmul.mubr.bf16.gmra.mrb[0].mxu0 %v246
    %v434 = vpop.f32.mrb[0].mxu0
    %v435 = vadd.f32 0.0, %v434
    %v436 = vpop.f32.mrb[0].mxu0
    %v437 = vpop.f32.mrb[0].mxu0
    %v438 = vadd.f32 0.0, %v437
    %v439 = vpop.f32.mrb[0].mxu0
    %440 = vmatprep.mubr.bf16.mxu0 0
    %441 = vmatmul.mubr.bf16.gmra.mrb[0].mxu0 %v247
    %v442 = vpop.f32.mrb[0].mxu0
    %v443 = vadd.f32 0.0, %v442
    %v444 = vpop.f32.mrb[0].mxu0
    %v445 = vpop.f32.mrb[0].mxu0
    %v446 = vadd.f32 0.0, %v445
    %v447 = vpop.f32.mrb[0].mxu0
    %448 = vmatprep.mubr.bf16.mxu0 0
    %449 = vmatmul.mubr.bf16.gmra.mrb[0].mxu0 %v248
    %v450 = vpop.f32.mrb[0].mxu0
    %v451 = vadd.f32 0.0, %v450
    %v452 = vpop.f32.mrb[0].mxu0
    %v453 = vpop.f32.mrb[0].mxu0
    %v454 = vadd.f32 0.0, %v453
    %v455 = vpop.f32.mrb[0].mxu0
    %456 = vmatprep.mubr.bf16.mxu0 0
    %457 = vmatmul.mubr.bf16.gmra.mrb[0].mxu0 %v249
    %v458 = vpop.f32.mrb[0].mxu0
    %v459 = vadd.f32 0.0, %v458
    %v460 = vpop.f32.mrb[0].mxu0
    %v461 = vpop.f32.mrb[0].mxu0
    %v462 = vadd.f32 0.0, %v461
    %v463 = vpop.f32.mrb[0].mxu0
    %464 = vmatprep.mubr.bf16.mxu0 0
    %465 = vmatmul.mubr.bf16.gmra.mrb[0].mxu0 %v250
    %v466 = vpop.f32.mrb[0].mxu0
    %v467 = vadd.f32 0.0, %v466
    %v468 = vpop.f32.mrb[0].mxu0
    %v469 = vpop.f32.mrb[0].mxu0
    %v470 = vadd.f32 0.0, %v469
    %v471 = vpop.f32.mrb[0].mxu0
    %472 = vmatprep.mubr.bf16.mxu0 0
    %473 = vmatmul.mubr.bf16.gmra.mrb[0].mxu0 %v251
    %v474 = vpop.f32.mrb[0].mxu0
    %v475 = vadd.f32 0.0, %v474
    %v476 = vpop.f32.mrb[0].mxu0
    %v477 = vpop.f32.mrb[0].mxu0
    %v478 = vadd.f32 0.0, %v477
    %v479 = vpop.f32.mrb[0].mxu0
    %480 = vmatprep.mubr.bf16.mxu0 0
    %481 = vmatmul.mubr.bf16.gmra.mrb[0].mxu0 %v252
    %v482 = vpop.f32.mrb[0].mxu0
    %v483 = vadd.f32 0.0, %v482
    %v484 = vpop.f32.mrb[0].mxu0
    %v485 = vpop.f32.mrb[0].mxu0
    %v486 = vadd.f32 0.0, %v485
    %v487 = vpop.f32.mrb[0].mxu0
    %488 = vmatprep.mubr.bf16.mxu0 0
    %489 = vmatmul.mubr.bf16.gmra.mrb[0].mxu0 %v253
    %v490 = vpop.f32.mrb[0].mxu0
    %v491 = vadd.f32 0.0, %v490
    %v492 = vpop.f32.mrb[0].mxu0
    %v493 = vpop.f32.mrb[0].mxu0
    %v494 = vadd.f32 0.0, %v493
    %v495 = vpop.f32.mrb[0].mxu0
    %496 = vmatprep.mubr.bf16.mxu0 0
    %497 = vmatmul.mubr.bf16.gmra.mrb[0].mxu0 %v254
    %v498 = vpop.f32.mrb[0].mxu0
    %v499 = vadd.f32 0.0, %v498
    %v500 = vpop.f32.mrb[0].mxu0
    %v501 = vpop.f32.mrb[0].mxu0
    %v502 = vadd.f32 0.0, %v501
    %v503 = vpop.f32.mrb[0].mxu0
    %504 = vmatprep.mubr.bf16.mxu0 0
    %505 = vmatmul.mubr.bf16.gmra.mrb[0].mxu0 %v255
    %v506 = vpop.f32.mrb[0].mxu0
    %v507 = vadd.f32 0.0, %v506
    %v508 = vpop.f32.mrb[0].mxu0
    %v509 = vpop.f32.mrb[0].mxu0
    %v510 = vadd.f32 0.0, %v509
    %v511 = vpop.f32.mrb[0].mxu0
    %512 = vmatprep.mubr.bf16.mxu0 0
    %513 = vmatmul.mubr.bf16.gmra.mrb[0].mxu0 %v256
    %v514 = vpop.f32.mrb[0].mxu0
    %v515 = vadd.f32 0.0, %v514
    %v516 = vpop.f32.mrb[0].mxu0
    %v517 = vpop.f32.mrb[0].mxu0
    %v518 = vadd.f32 0.0, %v517
    %v519 = vpop.f32.mrb[0].mxu0
    %520 = vmatprep.mubr.bf16.mxu0 0
    %521 = vmatmul.mubr.bf16.gmra.mrb[0].mxu0 %v257
    %v522 = vpop.f32.mrb[0].mxu0
    %v523 = vadd.f32 0.0, %v522
    %v524 = vpop.f32.mrb[0].mxu0
    %v525 = vpop.f32.mrb[0].mxu0
    %v526 = vadd.f32 0.0, %v525
    %v527 = vpop.f32.mrb[0].mxu0
    %528 = vmatprep.mubr.bf16.mxu0 0
    %529 = vmatmul.mubr.bf16.gmra.mrb[0].mxu0 %v258
    %v530 = vpop.f32.mrb[0].mxu0
    %v531 = vadd.f32 0.0, %v530
    %v532 = vpop.f32.mrb[0].mxu0
    %v533 = vpop.f32.mrb[0].mxu0
    %v534 = vadd.f32 0.0, %v533
    %v535 = vpop.f32.mrb[0].mxu0
    %536 = vmatprep.mubr.bf16.mxu0 0
    %537 = vmatmul.mubr.bf16.gmra.mrb[0].mxu0 %v259
    %v538 = vpop.f32.mrb[0].mxu0
    %v539 = vadd.f32 0.0, %v538
    %v540 = vpop.f32.mrb[0].mxu0
    %v541 = vpop.f32.mrb[0].mxu0
    %v542 = vadd.f32 0.0, %v541
    %v543 = vpop.f32.mrb[0].mxu0
    %544 = vmatprep.mubr.bf16.mxu0 0
    %545 = vmatmul.mubr.bf16.gmra.mrb[0].mxu0 %v260
    %v546 = vpop.f32.mrb[0].mxu0
    %v547 = vadd.f32 0.0, %v546
    %v548 = vpop.f32.mrb[0].mxu0
    %v549 = vpop.f32.mrb[0].mxu0
    %v550 = vadd.f32 0.0, %v549
    %v551 = vpop.f32.mrb[0].mxu0
    %552 = vmatprep.mubr.bf16.mxu0 0
    %553 = vmatmul.mubr.bf16.gmra.mrb[0].mxu0 %v261
    %v554 = vpop.f32.mrb[0].mxu0
    %v555 = vadd.f32 0.0, %v554
    %v556 = vpop.f32.mrb[0].mxu0
    %v557 = vpop.f32.mrb[0].mxu0
    %v558 = vadd.f32 0.0, %v557
    %v559 = vpop.f32.mrb[0].mxu0
    %560 = vmatprep.mubr.bf16.mxu0 0
    %561 = vmatmul.mubr.bf16.gmra.mrb[0].mxu0 %v262
    %v562 = vpop.f32.mrb[0].mxu0
    %v563 = vadd.f32 0.0, %v562
    %v564 = vpop.f32.mrb[0].mxu0
    %v565 = vpop.f32.mrb[0].mxu0
    %v566 = vadd.f32 0.0, %v565
    %v567 = vpop.f32.mrb[0].mxu0
    %568 = vmatprep.mubr.bf16.mxu0 0
    %569 = vmatmul.mubr.bf16.gmra.mrb[0].mxu0 %v263
    %v570 = vpop.f32.mrb[0].mxu0
    %v571 = vadd.f32 0.0, %v570
    %v572 = vpop.f32.mrb[0].mxu0
    %v573 = vpop.f32.mrb[0].mxu0
    %v574 = vadd.f32 0.0, %v573
    %v575 = vpop.f32.mrb[0].mxu0
    %576 = vmatprep.mubr.bf16.mxu0 0
    %577 = vmatmul.mubr.bf16.gmra.mrb[0].mxu0 %v264
    %v578 = vpop.f32.mrb[0].mxu0
    %v579 = vadd.f32 0.0, %v578
    %v580 = vpop.f32.mrb[0].mxu0
    %v581 = vpop.f32.mrb[0].mxu0
    %v582 = vadd.f32 0.0, %v581
    %v583 = vpop.f32.mrb[0].mxu0
    %584 = vmatprep.mubr.bf16.mxu0 0
    %585 = vmatmul.mubr.bf16.gmra.mrb[0].mxu0 %v265
    %v586 = vpop.f32.mrb[0].mxu0
    %v587 = vadd.f32 0.0, %v586
    %v588 = vpop.f32.mrb[0].mxu0
    %v589 = vpop.f32.mrb[0].mxu0
    %v590 = vadd.f32 0.0, %v589
    %v591 = vpop.f32.mrb[0].mxu0
    %592 = vmatprep.mubr.bf16.mxu0 0
    %593 = vmatmul.mubr.bf16.gmra.mrb[0].mxu0 %v266
    %v594 = vpop.f32.mrb[0].mxu0
    %v595 = vadd.f32 0.0, %v594
    %v596 = vpop.f32.mrb[0].mxu0
    %v597 = vpop.f32.mrb[0].mxu0
    %v598 = vadd.f32 0.0, %v597
    %v599 = vpop.f32.mrb[0].mxu0
    %600 = vmatprep.mubr.bf16.mxu0 0
    %601 = vmatmul.mubr.bf16.gmra.mrb[0].mxu0 %v267
    %v602 = vpop.f32.mrb[0].mxu0
    %v603 = vadd.f32 0.0, %v602
    %v604 = vpop.f32.mrb[0].mxu0
    %v605 = vpop.f32.mrb[0].mxu0
    %v606 = vadd.f32 0.0, %v605
    %v607 = vpop.f32.mrb[0].mxu0
    %608 = vmatprep.mubr.bf16.mxu0 0
    %609 = vmatmul.mubr.bf16.gmra.mrb[0].mxu0 %v268
    %v610 = vpop.f32.mrb[0].mxu0
    %v611 = vadd.f32 0.0, %v610
    %v612 = vpop.f32.mrb[0].mxu0
    %v613 = vpop.f32.mrb[0].mxu0
    %v614 = vadd.f32 0.0, %v613
    %v615 = vpop.f32.mrb[0].mxu0
    %616 = vmatprep.mubr.bf16.mxu0 0
    %617 = vmatmul.mubr.bf16.gmra.mrb[0].mxu0 %v269
    %v618 = vpop.f32.mrb[0].mxu0
    %v619 = vadd.f32 0.0, %v618
    %v620 = vpop.f32.mrb[0].mxu0
    %v621 = vpop.f32.mrb[0].mxu0
    %v622 = vadd.f32 0.0, %v621
    %v623 = vpop.f32.mrb[0].mxu0
    %624 = vmatprep.mubr.bf16.mxu0 0
    %625 = vmatmul.mubr.bf16.gmra.mrb[0].mxu0 %v270
    %v626 = vpop.f32.mrb[0].mxu0
    %v627 = vadd.f32 0.0, %v626
    %v628 = vpop.f32.mrb[0].mxu0
    %v629 = vpop.f32.mrb[0].mxu0
    %v630 = vadd.f32 0.0, %v629
    %v631 = vpop.f32.mrb[0].mxu0
    %632 = vmatprep.mubr.bf16.mxu0 0
    %633 = vmatmul.mubr.bf16.gmra.mrb[0].mxu0 %v271
    %v634 = vpop.f32.mrb[0].mxu0
    %v635 = vadd.f32 0.0, %v634
    %v636 = vpop.f32.mrb[0].mxu0
    %v637 = vpop.f32.mrb[0].mxu0
    %v638 = vadd.f32 0.0, %v637
    %v639 = vpop.f32.mrb[0].mxu0
    %640 = vdwg.mxu0
    %v641 = vld [vmem:[%s2] sm:$0x1]
    %v643 = vlaneseq
    %v644 = vshrl.u32 %v643, 7
    %v645 = vsub.s32 0, %v644
    %v646 = vrot.slane %v641, %v645
    %v648 = vmul.f32 %v387, %v646
    %v649 = vmul.f32 %v390, %v646
    %v650 = vmul.f32 %v395, %v646
    %v651 = vmul.f32 %v398, %v646
    %v652 = vmul.f32 %v403, %v646
    %v653 = vmul.f32 %v406, %v646
    %v654 = vmul.f32 %v411, %v646
    %v655 = vmul.f32 %v414, %v646
    %v656 = vmul.f32 %v419, %v646
    %v657 = vmul.f32 %v422, %v646
    %v658 = vmul.f32 %v427, %v646
    %v659 = vmul.f32 %v430, %v646
    %v660 = vmul.f32 %v435, %v646
    %v661 = vmul.f32 %v438, %v646
    %v662 = vmul.f32 %v443, %v646
    %v663 = vmul.f32 %v446, %v646
    %v664 = vmul.f32 %v451, %v646
    %v665 = vmul.f32 %v454, %v646
    %v666 = vmul.f32 %v459, %v646
    %v667 = vmul.f32 %v462, %v646
    %v668 = vmul.f32 %v467, %v646
    %v669 = vmul.f32 %v470, %v646
    %v670 = vmul.f32 %v475, %v646
    %v671 = vmul.f32 %v478, %v646
    %v672 = vmul.f32 %v483, %v646
    %v673 = vmul.f32 %v486, %v646
    %v674 = vmul.f32 %v491, %v646
    %v675 = vmul.f32 %v494, %v646
    %v676 = vmul.f32 %v499, %v646
    %v677 = vmul.f32 %v502, %v646
    %v678 = vmul.f32 %v507, %v646
    %v679 = vmul.f32 %v510, %v646
    %v680 = vmul.f32 %v515, %v646
    %v681 = vmul.f32 %v518, %v646
    %v682 = vmul.f32 %v523, %v646
    %v683 = vmul.f32 %v526, %v646
    %v684 = vmul.f32 %v531, %v646
    %v685 = vmul.f32 %v534, %v646
    %v686 = vmul.f32 %v539, %v646
    %v687 = vmul.f32 %v542, %v646
    %v688 = vmul.f32 %v547, %v646
    %v689 = vmul.f32 %v550, %v646
    %v690 = vmul.f32 %v555, %v646
    %v691 = vmul.f32 %v558, %v646
    %v692 = vmul.f32 %v563, %v646
    %v693 = vmul.f32 %v566, %v646
    %v694 = vmul.f32 %v571, %v646
    %v695 = vmul.f32 %v574, %v646
    %v696 = vmul.f32 %v579, %v646
    %v697 = vmul.f32 %v582, %v646
    %v698 = vmul.f32 %v587, %v646
    %v699 = vmul.f32 %v590, %v646
    %v700 = vmul.f32 %v595, %v646
    %v701 = vmul.f32 %v598, %v646
    %v702 = vmul.f32 %v603, %v646
    %v703 = vmul.f32 %v606, %v646
    %v704 = vmul.f32 %v611, %v646
    %v705 = vmul.f32 %v614, %v646
    %v706 = vmul.f32 %v619, %v646
    %v707 = vmul.f32 %v622, %v646
    %v708 = vmul.f32 %v627, %v646
    %v709 = vmul.f32 %v630, %v646
    %v710 = vmul.f32 %v635, %v646
    %v711 = vmul.f32 %v638, %v646
    %v712 = vld [vmem:[%s3] sm:$0x1]
    %v714 = vlaneseq
    %v715 = vshrl.u32 %v714, 7
    %v716 = vsub.s32 0, %v715
    %v717 = vrot.slane %v712, %v716
    %v719 = vadd.f32 %v648, %v717
    %v720 = vadd.f32 %v649, %v717
    %v721 = vadd.f32 %v650, %v717
    %v722 = vadd.f32 %v651, %v717
    %v723 = vadd.f32 %v652, %v717
    %v724 = vadd.f32 %v653, %v717
    %v725 = vadd.f32 %v654, %v717
    %v726 = vadd.f32 %v655, %v717
    %v727 = vadd.f32 %v656, %v717
    %v728 = vadd.f32 %v657, %v717
    %v729 = vadd.f32 %v658, %v717
    %v730 = vadd.f32 %v659, %v717
    %v731 = vadd.f32 %v660, %v717
    %v732 = vadd.f32 %v661, %v717
    %v733 = vadd.f32 %v662, %v717
    %v734 = vadd.f32 %v663, %v717
    %v735 = vadd.f32 %v664, %v717
    %v736 = vadd.f32 %v665, %v717
    %v737 = vadd.f32 %v666, %v717
    %v738 = vadd.f32 %v667, %v717
    %v739 = vadd.f32 %v668, %v717
    %v740 = vadd.f32 %v669, %v717
    %v741 = vadd.f32 %v670, %v717
    %v742 = vadd.f32 %v671, %v717
    %v743 = vadd.f32 %v672, %v717
    %v744 = vadd.f32 %v673, %v717
    %v745 = vadd.f32 %v674, %v717
    %v746 = vadd.f32 %v675, %v717
    %v747 = vadd.f32 %v676, %v717
    %v748 = vadd.f32 %v677, %v717
    %v749 = vadd.f32 %v678, %v717
    %v750 = vadd.f32 %v679, %v717
    %v751 = vadd.f32 %v680, %v717
    %v752 = vadd.f32 %v681, %v717
    %v753 = vadd.f32 %v682, %v717
    %v754 = vadd.f32 %v683, %v717
    %v755 = vadd.f32 %v684, %v717
    %v756 = vadd.f32 %v685, %v717
    %v757 = vadd.f32 %v686, %v717
    %v758 = vadd.f32 %v687, %v717
    %v759 = vadd.f32 %v688, %v717
    %v760 = vadd.f32 %v689, %v717
    %v761 = vadd.f32 %v690, %v717
    %v762 = vadd.f32 %v691, %v717
    %v763 = vadd.f32 %v692, %v717
    %v764 = vadd.f32 %v693, %v717
    %v765 = vadd.f32 %v694, %v717
    %v766 = vadd.f32 %v695, %v717
    %v767 = vadd.f32 %v696, %v717
    %v768 = vadd.f32 %v697, %v717
    %v769 = vadd.f32 %v698, %v717
    %v770 = vadd.f32 %v699, %v717
    %v771 = vadd.f32 %v700, %v717
    %v772 = vadd.f32 %v701, %v717
    %v773 = vadd.f32 %v702, %v717
    %v774 = vadd.f32 %v703, %v717
    %v775 = vadd.f32 %v704, %v717
    %v776 = vadd.f32 %v705, %v717
    %v777 = vadd.f32 %v706, %v717
    %v778 = vadd.f32 %v707, %v717
    %v779 = vadd.f32 %v708, %v717
    %v780 = vadd.f32 %v709, %v717
    %v781 = vadd.f32 %v710, %v717
    %v782 = vadd.f32 %v711, %v717
    %v783 = vmax.f32 %v719, 0.0
    %v784 = vmax.f32 %v720, 0.0
    %v785 = vmax.f32 %v721, 0.0
    %v786 = vmax.f32 %v722, 0.0
    %v787 = vmax.f32 %v723, 0.0
    %v788 = vmax.f32 %v724, 0.0
    %v789 = vmax.f32 %v725, 0.0
    %v790 = vmax.f32 %v726, 0.0
    %v791 = vmax.f32 %v727, 0.0
    %v792 = vmax.f32 %v728, 0.0
    %v793 = vmax.f32 %v729, 0.0
    %v794 = vmax.f32 %v730, 0.0
    %v795 = vmax.f32 %v731, 0.0
    %v796 = vmax.f32 %v732, 0.0
    %v797 = vmax.f32 %v733, 0.0
    %v798 = vmax.f32 %v734, 0.0
    %v799 = vmax.f32 %v735, 0.0
    %v800 = vmax.f32 %v736, 0.0
    %v801 = vmax.f32 %v737, 0.0
    %v802 = vmax.f32 %v738, 0.0
    %v803 = vmax.f32 %v739, 0.0
    %v804 = vmax.f32 %v740, 0.0
    %v805 = vmax.f32 %v741, 0.0
    %v806 = vmax.f32 %v742, 0.0
    %v807 = vmax.f32 %v743, 0.0
    %v808 = vmax.f32 %v744, 0.0
    %v809 = vmax.f32 %v745, 0.0
    %v810 = vmax.f32 %v746, 0.0
    %v811 = vmax.f32 %v747, 0.0
    %v812 = vmax.f32 %v748, 0.0
    %v813 = vmax.f32 %v749, 0.0
    %v814 = vmax.f32 %v750, 0.0
    %v815 = vmax.f32 %v751, 0.0
    %v816 = vmax.f32 %v752, 0.0
    %v817 = vmax.f32 %v753, 0.0
    %v818 = vmax.f32 %v754, 0.0
    %v819 = vmax.f32 %v755, 0.0
    %v820 = vmax.f32 %v756, 0.0
    %v821 = vmax.f32 %v757, 0.0
    %v822 = vmax.f32 %v758, 0.0
    %v823 = vmax.f32 %v759, 0.0
    %v824 = vmax.f32 %v760, 0.0
    %v825 = vmax.f32 %v761, 0.0
    %v826 = vmax.f32 %v762, 0.0
    %v827 = vmax.f32 %v763, 0.0
    %v828 = vmax.f32 %v764, 0.0
    %v829 = vmax.f32 %v765, 0.0
    %v830 = vmax.f32 %v766, 0.0
    %v831 = vmax.f32 %v767, 0.0
    %v832 = vmax.f32 %v768, 0.0
    %v833 = vmax.f32 %v769, 0.0
    %v834 = vmax.f32 %v770, 0.0
    %v835 = vmax.f32 %v771, 0.0
    %v836 = vmax.f32 %v772, 0.0
    %v837 = vmax.f32 %v773, 0.0
    %v838 = vmax.f32 %v774, 0.0
    %v839 = vmax.f32 %v775, 0.0
    %v840 = vmax.f32 %v776, 0.0
    %v841 = vmax.f32 %v777, 0.0
    %v842 = vmax.f32 %v778, 0.0
    %v843 = vmax.f32 %v779, 0.0
    %v844 = vmax.f32 %v780, 0.0
    %v845 = vmax.f32 %v781, 0.0
    %v846 = vmax.f32 %v782, 0.0
    %v847 = vpack.c.bf16 %v784, %v783
    %v848 = vpack.c.bf16 %v786, %v785
    %v849 = vpack.c.bf16 %v788, %v787
    %v850 = vpack.c.bf16 %v790, %v789
    %v851 = vpack.c.bf16 %v792, %v791
    %v852 = vpack.c.bf16 %v794, %v793
    %v853 = vpack.c.bf16 %v796, %v795
    %v854 = vpack.c.bf16 %v798, %v797
    %v855 = vpack.c.bf16 %v800, %v799
    %v856 = vpack.c.bf16 %v802, %v801
    %v857 = vpack.c.bf16 %v804, %v803
    %v858 = vpack.c.bf16 %v806, %v805
    %v859 = vpack.c.bf16 %v808, %v807
    %v860 = vpack.c.bf16 %v810, %v809
    %v861 = vpack.c.bf16 %v812, %v811
    %v862 = vpack.c.bf16 %v814, %v813
    %v863 = vpack.c.bf16 %v816, %v815
    %v864 = vpack.c.bf16 %v818, %v817
    %v865 = vpack.c.bf16 %v820, %v819
    %v866 = vpack.c.bf16 %v822, %v821
    %v867 = vpack.c.bf16 %v824, %v823
    %v868 = vpack.c.bf16 %v826, %v825
    %v869 = vpack.c.bf16 %v828, %v827
    %v870 = vpack.c.bf16 %v830, %v829
    %v871 = vpack.c.bf16 %v832, %v831
    %v872 = vpack.c.bf16 %v834, %v833
    %v873 = vpack.c.bf16 %v836, %v835
    %v874 = vpack.c.bf16 %v838, %v837
    %v875 = vpack.c.bf16 %v840, %v839
    %v876 = vpack.c.bf16 %v842, %v841
    %v877 = vpack.c.bf16 %v844, %v843
    %v878 = vpack.c.bf16 %v846, %v845
    %v911 = vunpack.c.l.b16 %v847
    %v912 = vunpack.c.h.b16 %v847
    %v913 = vunpack.c.l.b16 %v848
    %v914 = vunpack.c.h.b16 %v848
    %v915 = vunpack.c.l.b16 %v849
    %v916 = vunpack.c.h.b16 %v849
    %v917 = vunpack.c.l.b16 %v850
    %v918 = vunpack.c.h.b16 %v850
    %v919 = vunpack.c.l.b16 %v851
    %v920 = vunpack.c.h.b16 %v851
    %v921 = vunpack.c.l.b16 %v852
    %v922 = vunpack.c.h.b16 %v852
    %v923 = vunpack.c.l.b16 %v853
    %v924 = vunpack.c.h.b16 %v853
    %v925 = vunpack.c.l.b16 %v854
    %v926 = vunpack.c.h.b16 %v854
    %v927 = vunpack.c.l.b16 %v855
    %v928 = vunpack.c.h.b16 %v855
    %v929 = vunpack.c.l.b16 %v856
    %v930 = vunpack.c.h.b16 %v856
    %v931 = vunpack.c.l.b16 %v857
    %v932 = vunpack.c.h.b16 %v857
    %v933 = vunpack.c.l.b16 %v858
    %v934 = vunpack.c.h.b16 %v858
    %v935 = vunpack.c.l.b16 %v859
    %v936 = vunpack.c.h.b16 %v859
    %v937 = vunpack.c.l.b16 %v860
    %v938 = vunpack.c.h.b16 %v860
    %v939 = vunpack.c.l.b16 %v861
    %v940 = vunpack.c.h.b16 %v861
    %v941 = vunpack.c.l.b16 %v862
    %v942 = vunpack.c.h.b16 %v862
    %v943 = vunpack.c.l.b16 %v863
    %v944 = vunpack.c.h.b16 %v863
    %v945 = vunpack.c.l.b16 %v864
    %v946 = vunpack.c.h.b16 %v864
    %v947 = vunpack.c.l.b16 %v865
    %v948 = vunpack.c.h.b16 %v865
    %v949 = vunpack.c.l.b16 %v866
    %v950 = vunpack.c.h.b16 %v866
    %v951 = vunpack.c.l.b16 %v867
    %v952 = vunpack.c.h.b16 %v867
    %v953 = vunpack.c.l.b16 %v868
    %v954 = vunpack.c.h.b16 %v868
    %v955 = vunpack.c.l.b16 %v869
    %v956 = vunpack.c.h.b16 %v869
    %v957 = vunpack.c.l.b16 %v870
    %v958 = vunpack.c.h.b16 %v870
    %v959 = vunpack.c.l.b16 %v871
    %v960 = vunpack.c.h.b16 %v871
    %v961 = vunpack.c.l.b16 %v872
    %v962 = vunpack.c.h.b16 %v872
    %v963 = vunpack.c.l.b16 %v873
    %v964 = vunpack.c.h.b16 %v873
    %v965 = vunpack.c.l.b16 %v874
    %v966 = vunpack.c.h.b16 %v874
    %v967 = vunpack.c.l.b16 %v875
    %v968 = vunpack.c.h.b16 %v875
    %v969 = vunpack.c.l.b16 %v876
    %v970 = vunpack.c.h.b16 %v876
    %v971 = vunpack.c.l.b16 %v877
    %v972 = vunpack.c.h.b16 %v877
    %v973 = vunpack.c.l.b16 %v878
    %v974 = vunpack.c.h.b16 %v878
    %v975 = vpack.c.b16 %v911, %v911
    %v976 = vpack.c.b16 %v912, %v912
    %v977 = vpack.c.b16 %v913, %v913
    %v978 = vpack.c.b16 %v914, %v914
    %v979 = vpack.c.b16 %v915, %v915
    %v980 = vpack.c.b16 %v916, %v916
    %v981 = vpack.c.b16 %v917, %v917
    %v982 = vpack.c.b16 %v918, %v918
    %v983 = vpack.c.b16 %v919, %v919
    %v984 = vpack.c.b16 %v920, %v920
    %v985 = vpack.c.b16 %v921, %v921
    %v986 = vpack.c.b16 %v922, %v922
    %v987 = vpack.c.b16 %v923, %v923
    %v988 = vpack.c.b16 %v924, %v924
    %v989 = vpack.c.b16 %v925, %v925
    %v990 = vpack.c.b16 %v926, %v926
    %v991 = vpack.c.b16 %v927, %v927
    %v992 = vpack.c.b16 %v928, %v928
    %v993 = vpack.c.b16 %v929, %v929
    %v994 = vpack.c.b16 %v930, %v930
    %v995 = vpack.c.b16 %v931, %v931
    %v996 = vpack.c.b16 %v932, %v932
    %v997 = vpack.c.b16 %v933, %v933
    %v998 = vpack.c.b16 %v934, %v934
    %v999 = vpack.c.b16 %v935, %v935
    %v1000 = vpack.c.b16 %v936, %v936
    %v1001 = vpack.c.b16 %v937, %v937
    %v1002 = vpack.c.b16 %v938, %v938
    %v1003 = vpack.c.b16 %v939, %v939
    %v1004 = vpack.c.b16 %v940, %v940
    %v1005 = vpack.c.b16 %v941, %v941
    %v1006 = vpack.c.b16 %v942, %v942
    %v1007 = vpack.c.b16 %v943, %v943
    %v1008 = vpack.c.b16 %v944, %v944
    %v1009 = vpack.c.b16 %v945, %v945
    %v1010 = vpack.c.b16 %v946, %v946
    %v1011 = vpack.c.b16 %v947, %v947
    %v1012 = vpack.c.b16 %v948, %v948
    %v1013 = vpack.c.b16 %v949, %v949
    %v1014 = vpack.c.b16 %v950, %v950
    %v1015 = vpack.c.b16 %v951, %v951
    %v1016 = vpack.c.b16 %v952, %v952
    %v1017 = vpack.c.b16 %v953, %v953
    %v1018 = vpack.c.b16 %v954, %v954
    %v1019 = vpack.c.b16 %v955, %v955
    %v1020 = vpack.c.b16 %v956, %v956
    %v1021 = vpack.c.b16 %v957, %v957
    %v1022 = vpack.c.b16 %v958, %v958
    %v1023 = vpack.c.b16 %v959, %v959
    %v1024 = vpack.c.b16 %v960, %v960
    %v1025 = vpack.c.b16 %v961, %v961
    %v1026 = vpack.c.b16 %v962, %v962
    %v1027 = vpack.c.b16 %v963, %v963
    %v1028 = vpack.c.b16 %v964, %v964
    %v1029 = vpack.c.b16 %v965, %v965
    %v1030 = vpack.c.b16 %v966, %v966
    %v1031 = vpack.c.b16 %v967, %v967
    %v1032 = vpack.c.b16 %v968, %v968
    %v1033 = vpack.c.b16 %v969, %v969
    %v1034 = vpack.c.b16 %v970, %v970
    %v1035 = vpack.c.b16 %v971, %v971
    %v1036 = vpack.c.b16 %v972, %v972
    %v1037 = vpack.c.b16 %v973, %v973
    %v1038 = vpack.c.b16 %v974, %v974
    %vm1103 = vcmask 257024
    %1104 = vst.msk [vmem:[%s4] sm:$0xf] %vm1103, %v975
    %1105 = vst.msk [vmem:[%s4 + $0x4] sm:$0xf] %vm1103, %v976
    %1106 = vst.msk [vmem:[%s4 + $0x8] sm:$0xf] %vm1103, %v977
    %1107 = vst.msk [vmem:[%s4 + $0xc] sm:$0xf] %vm1103, %v978
    %1108 = vst.msk [vmem:[%s4 + $0x10] sm:$0xf] %vm1103, %v979
    %1109 = vst.msk [vmem:[%s4 + $0x14] sm:$0xf] %vm1103, %v980
    %1110 = vst.msk [vmem:[%s4 + $0x18] sm:$0xf] %vm1103, %v981
    %1111 = vst.msk [vmem:[%s4 + $0x1c] sm:$0xf] %vm1103, %v982
    %1112 = vst.msk [vmem:[%s4 + $0x20] sm:$0xf] %vm1103, %v983
    %1113 = vst.msk [vmem:[%s4 + $0x24] sm:$0xf] %vm1103, %v984
    %1114 = vst.msk [vmem:[%s4 + $0x28] sm:$0xf] %vm1103, %v985
    %1115 = vst.msk [vmem:[%s4 + $0x2c] sm:$0xf] %vm1103, %v986
    %1116 = vst.msk [vmem:[%s4 + $0x30] sm:$0xf] %vm1103, %v987
    %1117 = vst.msk [vmem:[%s4 + $0x34] sm:$0xf] %vm1103, %v988
    %1118 = vst.msk [vmem:[%s4 + $0x38] sm:$0xf] %vm1103, %v989
    %1119 = vst.msk [vmem:[%s4 + $0x3c] sm:$0xf] %vm1103, %v990
    %1120 = vst.msk [vmem:[%s4 + $0x40] sm:$0xf] %vm1103, %v991
    %1121 = vst.msk [vmem:[%s4 + $0x44] sm:$0xf] %vm1103, %v992
    %1122 = vst.msk [vmem:[%s4 + $0x48] sm:$0xf] %vm1103, %v993
    %1123 = vst.msk [vmem:[%s4 + $0x4c] sm:$0xf] %vm1103, %v994
    %1124 = vst.msk [vmem:[%s4 + $0x50] sm:$0xf] %vm1103, %v995
    %1125 = vst.msk [vmem:[%s4 + $0x54] sm:$0xf] %vm1103, %v996
    %1126 = vst.msk [vmem:[%s4 + $0x58] sm:$0xf] %vm1103, %v997
    %1127 = vst.msk [vmem:[%s4 + $0x5c] sm:$0xf] %vm1103, %v998
    %1128 = vst.msk [vmem:[%s4 + $0x60] sm:$0xf] %vm1103, %v999
    %1129 = vst.msk [vmem:[%s4 + $0x64] sm:$0xf] %vm1103, %v1000
    %1130 = vst.msk [vmem:[%s4 + $0x68] sm:$0xf] %vm1103, %v1001
    %1131 = vst.msk [vmem:[%s4 + $0x6c] sm:$0xf] %vm1103, %v1002
    %1132 = vst.msk [vmem:[%s4 + $0x70] sm:$0xf] %vm1103, %v1003
    %1133 = vst.msk [vmem:[%s4 + $0x74] sm:$0xf] %vm1103, %v1004
    %1134 = vst.msk [vmem:[%s4 + $0x78] sm:$0xf] %vm1103, %v1005
    %1135 = vst.msk [vmem:[%s4 + $0x7c] sm:$0xf] %vm1103, %v1006
    %1136 = vst.msk [vmem:[%s4 + $0x80] sm:$0xf] %vm1103, %v1007
    %1137 = vst.msk [vmem:[%s4 + $0x84] sm:$0xf] %vm1103, %v1008
    %1138 = vst.msk [vmem:[%s4 + $0x88] sm:$0xf] %vm1103, %v1009
    %1139 = vst.msk [vmem:[%s4 + $0x8c] sm:$0xf] %vm1103, %v1010
    %1140 = vst.msk [vmem:[%s4 + $0x90] sm:$0xf] %vm1103, %v1011
    %1141 = vst.msk [vmem:[%s4 + $0x94] sm:$0xf] %vm1103, %v1012
    %1142 = vst.msk [vmem:[%s4 + $0x98] sm:$0xf] %vm1103, %v1013
    %1143 = vst.msk [vmem:[%s4 + $0x9c] sm:$0xf] %vm1103, %v1014
    %1144 = vst.msk [vmem:[%s4 + $0xa0] sm:$0xf] %vm1103, %v1015
    %1145 = vst.msk [vmem:[%s4 + $0xa4] sm:$0xf] %vm1103, %v1016
    %1146 = vst.msk [vmem:[%s4 + $0xa8] sm:$0xf] %vm1103, %v1017
    %1147 = vst.msk [vmem:[%s4 + $0xac] sm:$0xf] %vm1103, %v1018
    %1148 = vst.msk [vmem:[%s4 + $0xb0] sm:$0xf] %vm1103, %v1019
    %1149 = vst.msk [vmem:[%s4 + $0xb4] sm:$0xf] %vm1103, %v1020
    %1150 = vst.msk [vmem:[%s4 + $0xb8] sm:$0xf] %vm1103, %v1021
    %1151 = vst.msk [vmem:[%s4 + $0xbc] sm:$0xf] %vm1103, %v1022
    %1152 = vst.msk [vmem:[%s4 + $0xc0] sm:$0xf] %vm1103, %v1023
    %1153 = vst.msk [vmem:[%s4 + $0xc4] sm:$0xf] %vm1103, %v1024
    %1154 = vst.msk [vmem:[%s4 + $0xc8] sm:$0xf] %vm1103, %v1025
    %1155 = vst.msk [vmem:[%s4 + $0xcc] sm:$0xf] %vm1103, %v1026
    %1156 = vst.msk [vmem:[%s4 + $0xd0] sm:$0xf] %vm1103, %v1027
    %1157 = vst.msk [vmem:[%s4 + $0xd4] sm:$0xf] %vm1103, %v1028
    %1158 = vst.msk [vmem:[%s4 + $0xd8] sm:$0xf] %vm1103, %v1029
    %1159 = vst.msk [vmem:[%s4 + $0xdc] sm:$0xf] %vm1103, %v1030
    %1160 = vst.msk [vmem:[%s4 + $0xe0] sm:$0xf] %vm1103, %v1031
    %1161 = vst.msk [vmem:[%s4 + $0xe4] sm:$0xf] %vm1103, %v1032
    %1162 = vst.msk [vmem:[%s4 + $0xe8] sm:$0xf] %vm1103, %v1033
    %1163 = vst.msk [vmem:[%s4 + $0xec] sm:$0xf] %vm1103, %v1034
    %1164 = vst.msk [vmem:[%s4 + $0xf0] sm:$0xf] %vm1103, %v1035
    %1165 = vst.msk [vmem:[%s4 + $0xf4] sm:$0xf] %vm1103, %v1036
    %1166 = vst.msk [vmem:[%s4 + $0xf8] sm:$0xf] %vm1103, %v1037
    %1167 = vst.msk [vmem:[%s4 + $0xfc] sm:$0xf] %vm1103, %v1038
    // Predicated region
    $region22: #{tpu_custom_call.1} parent=1 // pred_check
      _
    $region23: #{tpu_custom_call.1} parent=1 // pred_check_branch
      %1169 = sbr.rel (0) target = $region25
    $region24: #{tpu_custom_call.1} parent=1 // pred_region
      _
    $region25: #{tpu_custom_call.1} parent=1 // pred_fallthru
      _
    // Predicated region
    $region26: #{tpu_custom_call.1} parent=1 // pred_check
      _
    $region27: #{tpu_custom_call.1} parent=1 // pred_check_branch
      %1171 = sbr.rel (0) target = $region29
    $region28: #{tpu_custom_call.1} parent=1 // pred_region
      _
    $region29: #{tpu_custom_call.1} parent=1 // pred_fallthru
      _
    %1172 = vsyncpa [#allocation3], 1

</llo_original>
